<compile_context>
chip_gen: v7x
topology: tpu7x:2x2x1
jax: 0.10.0
libtpu: 0.0.40
codegen_flags: <defaults>
</compile_context>

<pallas_src>
import functools

import jax
import jax.numpy as jnp
from jax.experimental import pallas as pl
from jax.experimental.pallas import tpu as pltpu

MARGIN = 1.0
EPS = 1e-6        # F.pairwise_distance default eps
LANES = 128


def _round_up(x, m):
    return ((x + m - 1) // m) * m


def _detect_num_tensorcores():
    """Best-effort TensorCore count (2 on v7x, 1 on v5e/v6e). Safe fallback: 1."""
    try:
        dev = jax.devices()[0]
        if getattr(dev, "platform", "") != "tpu":
            return 1
        n = getattr(dev, "num_cores", None)
        if isinstance(n, int) and n >= 1:
            return min(int(n), 2)
        kind = str(getattr(dev, "device_kind", "")).lower()
        return 2 if "v7" in kind else 1
    except Exception:
        return 1


def _contrastive_loss_kernel(f_ref, m_ref, out_ref, acc_ref, *,
                             d, tile_p, num_pairs, margin):
    # f_ref:   (tile_p, 2*d) f32 VMEM — pair-major features; [:, :d] = even rows,
    #          [:, d:] = odd rows (pure lane slices when d % 128 == 0).
    # m_ref:   (tile_p, 1)   f32 VMEM — (labels1 == labels2) per pair.
    # out_ref: (1, 1, 1)     f32 VMEM — per-core-split total (written in epilogue).
    # acc_ref: (tile_p, 1)   f32 VMEM scratch — per-row running sum across tiles.
    c = pl.program_id(0)
    t = pl.program_id(1)
    nt = pl.num_programs(1)

    @pl.when(t == 0)
    def _init():
        acc_ref[...] = jnp.zeros_like(acc_ref)
        out_ref[...] = jnp.zeros_like(out_ref)

    f = f_ref[...]
    diff = f[:, :d] - f[:, d:2 * d] + EPS          # pairwise_distance eps
    d2 = diff * diff

    # Two-stage reduction over D: fold 128-lane groups on the VPU first, then one
    # cross-lane XLU reduce (XLU has only 2 units on v6e/v7x).
    if d > LANES and d % LANES == 0:
        folded = d2[:, :LANES]
        for i in range(1, d // LANES):
            folded = folded + d2[:, i * LANES:(i + 1) * LANES]
        sq = jnp.sum(folded, axis=-1, keepdims=True)       # (tile_p, 1) == distance**2
    else:
        sq = jnp.sum(d2, axis=-1, keepdims=True)

    dist = jnp.sqrt(sq)                                     # only the hinge needs sqrt
    mask = m_ref[...]                                       # {0.0, 1.0}
    hinge = jnp.maximum(margin - dist, 0.0)
    loss = 0.5 * ((1.0 - mask) * sq + mask * hinge * hinge)

    # Rows past the true pair count (partial last tile / clamped overflow tile of the
    # core split) must not contribute.  The UN-clamped block index makes overflow tiles
    # contribute exactly zero, and jnp.where squashes any garbage from padded rows.
    blk = c * nt + t
    local = jax.lax.broadcasted_iota(jnp.int32, (tile_p, 1), 0)
    valid = (blk * tile_p + local) < num_pairs
    acc_ref[...] += jnp.where(valid, loss, 0.0)

    # Deferred epilogue: one cross-sublane reduce + output write per core split.
    @pl.when(t == nt - 1)
    def _finalize():
        out_ref[...] += jnp.sum(acc_ref[...], axis=0, keepdims=True)


def contrastive_loss(features, labels, margin=MARGIN, tile_pairs=None):
    """features: (N, D) float32, labels: (N,) int; N must be even.  Returns scalar f32.

    tile_pairs: pairs per grid step.  Default (None) derives it from an ~8 MiB VMEM
    feature-block budget as a function of D (Pallas double-buffers it), which sits on
    the large-tile HBM-roofline plateau for v5e/v6e/v7x.
    """
    n, d = features.shape
    assert n % 2 == 0, "ContrastiveLoss pairs consecutive rows; N must be even"
    p = n // 2

    # D-aware tile size: feature block = tile_p * 2*d * 4 bytes  (target ~8 MiB).
    if tile_pairs is None:
        budget_bytes = 8 << 20
        tile_pairs = max(8, (budget_bytes // (2 * d * 4)) // 8 * 8)
    tile_p = max(8, _round_up(min(int(tile_pairs), _round_up(p, 8)), 8))
    num_blocks = pl.cdiv(p, tile_p)

    nc = _detect_num_tensorcores()                 # 2-way split only on dual-TC chips
    nc = nc if num_blocks >= 2 else 1
    t_per_core = pl.cdiv(num_blocks, nc)

    # Explicit scoped-VMEM limit: double-buffered feature blocks + scratch + headroom;
    # above the 16/32 MiB scoped defaults, below v7x's 64 MiB physical VMEM.
    feat_block_bytes = tile_p * 2 * d * 4
    vmem_limit = int(min(48 << 20, max(32 << 20, 2 * feat_block_bytes + (4 << 20))))

    # Zero-cost contiguous reshape: rows 2i and 2i+1 become the two D-wide lane halves
    # of pair-row i.  No XLA-side gather/copy of the big feature tensor.
    features_pairs = features.reshape(p, 2 * d)
    # Labels only matter through per-pair equality -> tiny O(N) wrapper op.
    mask = (labels[0::2] == labels[1::2]).astype(jnp.float32).reshape(p, 1)

    def _blk(c, t):
        # Clamp overflow tiles of the core split; their rows are masked in-kernel.
        return jnp.minimum(c * t_per_core + t, num_blocks - 1)

    kernel = functools.partial(_contrastive_loss_kernel, d=d, tile_p=tile_p,
                               num_pairs=p, margin=float(margin))

    partial_sums = pl.pallas_call(
        kernel,
        out_shape=jax.ShapeDtypeStruct((nc, 1, 1), jnp.float32),
        grid=(nc, t_per_core),
        in_specs=[
            pl.BlockSpec((tile_p, 2 * d), lambda c, t: (_blk(c, t), 0)),
            pl.BlockSpec((tile_p, 1), lambda c, t: (_blk(c, t), 0)),
        ],
        out_specs=pl.BlockSpec((1, 1, 1), lambda c, t: (c, 0, 0)),
        scratch_shapes=[pltpu.VMEM((tile_p, 1), jnp.float32)],
        compiler_params=pltpu.CompilerParams(
            dimension_semantics=("parallel", "arbitrary"),
            vmem_limit_bytes=vmem_limit),
        cost_estimate=pl.CostEstimate(
            flops=4 * n * d, transcendentals=p,
            bytes_accessed=n * d * 4 + p * 4 + nc * 4),
    )(features_pairs, mask)

    return jnp.sum(partial_sums) / p


def init_params(embedding_size=128):
    """Deterministic init of the (unused-in-forward) nn.Linear(embedding_size, embedding_size)."""
    # TODO(synk): the PyTorch forward never applies self.embedding; kept only for __init__ fidelity.
    kw, kb = jax.random.split(jax.random.PRNGKey(42))
    bound = 1.0 / (embedding_size ** 0.5)
    w = jax.random.uniform(kw, (embedding_size, embedding_size), jnp.float32, -bound, bound)
    b = jax.random.uniform(kb, (embedding_size,), jnp.float32, -bound, bound)
    return {"embedding_w": w, "embedding_b": b}


def _reference_loss(features, labels, margin):
    f1, f2 = features[0::2], features[1::2]
    l1, l2 = labels[0::2], labels[1::2]
    dist = jnp.sqrt(jnp.sum((f1 - f2 + EPS) ** 2, axis=-1))
    m = (l1 == l2).astype(jnp.float32)
    return jnp.mean(0.5 * (1.0 - m) * dist ** 2
                    + 0.5 * m * jnp.maximum(margin - dist, 0.0) ** 2)


if __name__ == "__main__":
    embedding_size = 128
    batch = 72          # 36 pairs -> exercises partial tiles and the multi-tile path

    key = jax.random.PRNGKey(0)
    kf, kl, kf2, kl2 = jax.random.split(key, 4)
    features = jax.random.normal(kf, (batch, embedding_size), dtype=jnp.float32)
    labels = jax.random.randint(kl, (batch,), 0, 2, dtype=jnp.int32)

    _ = init_params(embedding_size)  # module params (never applied in forward, as in PyTorch)

    fn = jax.jit(contrastive_loss, static_argnames=("margin", "tile_pairs"))
    loss_single = fn(features, labels)                  # one big tile (default budget)
    loss_tiled = fn(features, labels, tile_pairs=8)     # multi-tile (+ core-split on v7x)

    # D > 128 exercises the two-stage (VPU fold + single XLU) reduction path.
    features_wide = jax.random.normal(kf2, (16, 256), dtype=jnp.float32)
    labels_wide = jax.random.randint(kl2, (16,), 0, 2, dtype=jnp.int32)
    loss_wide = fn(features_wide, labels_wide)

    jax.block_until_ready((loss_single, loss_tiled, loss_wide))

    ref = _reference_loss(features, labels, MARGIN)
    ref_wide = _reference_loss(features_wide, labels_wide, MARGIN)
    assert jnp.allclose(loss_single, ref, rtol=1e-5, atol=1e-5), (loss_single, ref)
    assert jnp.allclose(loss_tiled, ref, rtol=1e-5, atol=1e-5), (loss_tiled, ref)
    assert jnp.allclose(loss_wide, ref_wide, rtol=1e-5, atol=1e-5), (loss_wide, ref_wide)
    print("KERNEL_OK")
</pallas_src>

<mosaic_0001>
module attributes {stable_mosaic.version = 11 : i64} {
  func.func @_contrastive_loss_kernel(%arg0: i32, %arg1: i32, %arg2: memref<40x256xf32, #tpu.memory_space<vmem>>, %arg3: memref<40x1xf32, #tpu.memory_space<vmem>>, %arg4: memref<1x1x1xf32, #tpu.memory_space<vmem>>, %arg5: memref<40x1xf32, #tpu.memory_space<vmem>>) attributes {dimension_semantics = [#tpu.dimension_semantics<parallel>, #tpu.dimension_semantics<arbitrary>], iteration_bounds = array<i64: 1, 1>, scalar_prefetch = 0 : i64, scratch_operands = 1 : i64, tpu.core_type = #tpu.core_type<tc>, window_params = [{transform_indices = @transform_0, window_bounds = array<i64: 40, 256>}, {transform_indices = @transform_1, window_bounds = array<i64: 40, 1>}, {transform_indices = @transform_2, window_bounds = array<i64: 1, 1, 1>}]} {
    %c0_i32 = arith.constant 0 : i32
    %0 = arith.cmpi eq, %arg1, %c0_i32 : i32
    %1 = arith.extui %0 : i1 to i32
    %c0_i32_0 = arith.constant 0 : i32
    %2 = arith.cmpi ne, %1, %c0_i32_0 : i32
    scf.if %2 {
      %cst_16 = arith.constant 0.000000e+00 : f32
      %42 = vector.broadcast %cst_16 : f32 to vector<40x1xf32>
      %c0_17 = arith.constant 0 : index
      %c0_18 = arith.constant 0 : index
      %43 = vector.load %arg5[%c0_17, %c0_18] : memref<40x1xf32, #tpu.memory_space<vmem>>, vector<40x1xf32>
      tpu.vector_store %arg5[%c0_17, %c0_18], %42 {strides = array<i32>} : memref<40x1xf32, #tpu.memory_space<vmem>>, vector<40x1xf32>,
      %cst_19 = arith.constant 0.000000e+00 : f32
      %44 = vector.broadcast %cst_19 : f32 to vector<1x1x1xf32>
      %c0_20 = arith.constant 0 : index
      %c0_21 = arith.constant 0 : index
      %c0_22 = arith.constant 0 : index
      %45 = vector.load %arg4[%c0_20, %c0_21, %c0_22] : memref<1x1x1xf32, #tpu.memory_space<vmem>>, vector<1x1x1xf32>
      tpu.vector_store %arg4[%c0_20, %c0_21, %c0_22], %44 {strides = array<i32>} : memref<1x1x1xf32, #tpu.memory_space<vmem>>, vector<1x1x1xf32>,
    } else {
    }
    %c0 = arith.constant 0 : index
    %c0_1 = arith.constant 0 : index
    %3 = vector.load %arg2[%c0, %c0_1] : memref<40x256xf32, #tpu.memory_space<vmem>>, vector<40x256xf32>
    %4 = vector.extract_strided_slice %3 {offsets = [0, 0], sizes = [40, 128], strides = [1, 1]} : vector<40x256xf32> to vector<40x128xf32>
    %5 = vector.extract_strided_slice %3 {offsets = [0, 128], sizes = [40, 128], strides = [1, 1]} : vector<40x256xf32> to vector<40x128xf32>
    %6 = arith.subf %4, %5 : vector<40x128xf32>
    %cst = arith.constant 9.99999997E-7 : f32
    %7 = vector.broadcast %cst : f32 to vector<40x128xf32>
    %8 = arith.addf %6, %7 : vector<40x128xf32>
    %9 = arith.mulf %8, %8 : vector<40x128xf32>
    %cst_2 = arith.constant dense<0.000000e+00> : vector<40xf32>
    %10 = vector.multi_reduction <add>, %9, %cst_2 [1] : vector<40x128xf32> to vector<40xf32>
    %11 = vector.shape_cast %10 : vector<40xf32> to vector<40x1xf32>
    %12 = math.sqrt %11 : vector<40x1xf32>
    %c0_3 = arith.constant 0 : index
    %c0_4 = arith.constant 0 : index
    %13 = vector.load %arg3[%c0_3, %c0_4] : memref<40x1xf32, #tpu.memory_space<vmem>>, vector<40x1xf32>
    %cst_5 = arith.constant 1.000000e+00 : f32
    %14 = vector.broadcast %cst_5 : f32 to vector<40x1xf32>
    %15 = arith.subf %14, %12 : vector<40x1xf32>
    %cst_6 = arith.constant 0.000000e+00 : f32
    %16 = vector.broadcast %cst_6 : f32 to vector<40x1xf32>
    %17 = arith.maximumf %15, %16 : vector<40x1xf32>
    %cst_7 = arith.constant 1.000000e+00 : f32
    %18 = vector.broadcast %cst_7 : f32 to vector<40x1xf32>
    %19 = arith.subf %18, %13 : vector<40x1xf32>
    %20 = arith.mulf %19, %11 : vector<40x1xf32>
    %21 = arith.mulf %13, %17 : vector<40x1xf32>
    %22 = arith.mulf %21, %17 : vector<40x1xf32>
    %23 = arith.addf %20, %22 : vector<40x1xf32>
    %cst_8 = arith.constant 5.000000e-01 : f32
    %24 = vector.broadcast %cst_8 : f32 to vector<40x1xf32>
    %25 = arith.mulf %24, %23 : vector<40x1xf32>
    %c1_i32 = arith.constant 1 : i32
    %26 = arith.muli %arg0, %c1_i32 : i32
    %27 = arith.addi %26, %arg1 : i32
    %28 = tpu.iota {dimensions = array<i32: 0>} : vector<40x1xi32>
    %c40_i32 = arith.constant 40 : i32
    %29 = arith.muli %27, %c40_i32 : i32
    %30 = vector.broadcast %29 : i32 to vector<40x1xi32>
    %31 = arith.addi %30, %28 : vector<40x1xi32>
    %c36_i32 = arith.constant 36 : i32
    %32 = vector.broadcast %c36_i32 : i32 to vector<40x1xi32>
    %33 = arith.cmpi slt, %31, %32 : vector<40x1xi32>
    %c0_9 = arith.constant 0 : index
    %c0_10 = arith.constant 0 : index
    %34 = vector.load %arg5[%c0_9, %c0_10] : memref<40x1xf32, #tpu.memory_space<vmem>>, vector<40x1xf32>
    %cst_11 = arith.constant 0.000000e+00 : f32
    %35 = vector.broadcast %cst_11 : f32 to vector<40x1xf32>
    %36 = arith.select %33, %25, %35 : vector<40x1xi1>, vector<40x1xf32>
    %37 = arith.addf %34, %36 : vector<40x1xf32>
    %c0_12 = arith.constant 0 : index
    %c0_13 = arith.constant 0 : index
    %38 = vector.load %arg5[%c0_12, %c0_13] : memref<40x1xf32, #tpu.memory_space<vmem>>, vector<40x1xf32>
    tpu.vector_store %arg5[%c0_12, %c0_13], %37 {strides = array<i32>} : memref<40x1xf32, #tpu.memory_space<vmem>>, vector<40x1xf32>,
    %c0_i32_14 = arith.constant 0 : i32
    %39 = arith.cmpi eq, %arg1, %c0_i32_14 : i32
    %40 = arith.extui %39 : i1 to i32
    %c0_i32_15 = arith.constant 0 : i32
    %41 = arith.cmpi ne, %40, %c0_i32_15 : i32
    scf.if %41 {
      %c0_16 = arith.constant 0 : index
      %c0_17 = arith.constant 0 : index
      %c0_18 = arith.constant 0 : index
      %42 = vector.load %arg4[%c0_16, %c0_17, %c0_18] : memref<1x1x1xf32, #tpu.memory_space<vmem>>, vector<1x1x1xf32>
      %c0_19 = arith.constant 0 : index
      %c0_20 = arith.constant 0 : index
      %43 = vector.load %arg5[%c0_19, %c0_20] : memref<40x1xf32, #tpu.memory_space<vmem>>, vector<40x1xf32>
      %cst_21 = arith.constant dense<0.000000e+00> : vector<1xf32>
      %44 = vector.multi_reduction <add>, %43, %cst_21 [0] : vector<40x1xf32> to vector<1xf32>
      %45 = vector.shape_cast %44 : vector<1xf32> to vector<1x1xf32>
      %46 = vector.shape_cast %45 : vector<1x1xf32> to vector<1x1x1xf32>
      %47 = arith.addf %42, %46 : vector<1x1x1xf32>
      %c0_22 = arith.constant 0 : index
      %c0_23 = arith.constant 0 : index
      %c0_24 = arith.constant 0 : index
      %48 = vector.load %arg4[%c0_22, %c0_23, %c0_24] : memref<1x1x1xf32, #tpu.memory_space<vmem>>, vector<1x1x1xf32>
      tpu.vector_store %arg4[%c0_22, %c0_23, %c0_24], %47 {strides = array<i32>} : memref<1x1x1xf32, #tpu.memory_space<vmem>>, vector<1x1x1xf32>,
    } else {
    }
    return
  }
  func.func @transform_0(%arg0: i32, %arg1: i32) -> (i32, i32) {
    %c1_i32 = arith.constant 1 : i32
    %0 = arith.muli %arg0, %c1_i32 : i32
    %1 = arith.addi %0, %arg1 : i32
    %c0_i32 = arith.constant 0 : i32
    %2 = arith.minsi %1, %c0_i32 : i32
    %c0_i32_0 = arith.constant 0 : i32
    %c0_i32_1 = arith.constant 0 : i32
    return %2, %c0_i32_0 : i32, i32
  }
  func.func @transform_1(%arg0: i32, %arg1: i32) -> (i32, i32) {
    %c1_i32 = arith.constant 1 : i32
    %0 = arith.muli %arg0, %c1_i32 : i32
    %1 = arith.addi %0, %arg1 : i32
    %c0_i32 = arith.constant 0 : i32
    %2 = arith.minsi %1, %c0_i32 : i32
    %c0_i32_0 = arith.constant 0 : i32
    %c0_i32_1 = arith.constant 0 : i32
    return %2, %c0_i32_0 : i32, i32
  }
  func.func @transform_2(%arg0: i32, %arg1: i32) -> (i32, i32, i32) {
    %c0_i32 = arith.constant 0 : i32
    %c0_i32_0 = arith.constant 0 : i32
    %c0_i32_1 = arith.constant 0 : i32
    return %arg0, %c0_i32, %c0_i32_0 : i32, i32, i32
  }
}

</mosaic_0001>

<llo_original>
// kernel: contrastive_loss.1
$region0: #{contrastive_loss.1}
  #allocation0 [shape = 'u32[]', space=smem, size = 0x4, offset = 0x4, fixed_abs, tag = 'smem constant byte address 0x4 - core index']
  #allocation1 [shape = 'u32[144,128]{1,0:T(1,128)}', space=vmem, size = 0x12000, scoped, tag = 'internal scratch']
  #allocation2 [shape = 'f32[40,1]{1,0:T(8,128)}', space=vmem, size = 0x5000, scoped, tag = 'scratch operand']
  %s0 = inlined_call_operand.vmem [shape: f32[36,256], index: 0, kind: input, shape index: {}]
  %s1 = inlined_call_operand.vmem [shape: f32[36,1], index: 1, kind: input, shape index: {}]
  %s2 = inlined_call_operand.hbm [shape: f32[1,1,1], index: 2, kind: output, shape index: {}]
  %s3 = sld [smem:[#allocation0]]
  $region26: #{contrastive_loss.1} parent=0
    _
  %s5 = ssub.s32 1, %s3
  %s6 = scalar_select 0, %s5, %s3
  $region1: #{contrastive_loss.1} parent=0
    #allocation3 [shape = 'u8[512]{0}', space=vmem, size = 0x400, scoped, tag = 'output window, operand 0, single buffered']
    #allocation4 [shape = 's32[1]{0}', space=sflag, size = 0x4, scoped, tag = 'scoped memory for contrastive_loss.1']
    %7 = vsyncpa [#allocation4], 0
    // Predicated region
    $region2: #{contrastive_loss.1} parent=1 // pred_check
      _
    $region3: #{contrastive_loss.1} parent=1 // pred_check_branch
      %9 = sbr.rel (0) target = $region5
    $region4: #{contrastive_loss.1} parent=1 // pred_region
      %s10 = sadd.s32 0, 0
      %p11 = scmp.lt.s32.totalorder %s10, 0
      %s12 = scalar_select %p11, %s10, 0
      %s13 = smul.u32 5, %s12
      %p14 = scmp.lt.s32.totalorder %s13, 4
      %s15 = scalar_select %p14, %s13, 4
      %s16 = smul.addr %s15, 2
      %s17 = smul.addr %s16, 8
      %s18 = scalar_lea.vmem %s0, %s17
      %s19 = sadd.s32 0, 0
      %p20 = scmp.lt.s32.totalorder %s19, 0
      %s21 = scalar_select %p20, %s19, 0
      %s22 = smul.u32 5, %s21
    $region5: #{contrastive_loss.1} parent=1 // pred_fallthru
      _
    // Predicated region
    $region6: #{contrastive_loss.1} parent=1 // pred_check
      _
    $region7: #{contrastive_loss.1} parent=1 // pred_check_branch
      %24 = sbr.rel (0) target = $region9
    $region8: #{contrastive_loss.1} parent=1 // pred_region
      %s25 = sadd.s32 0, 0
      %p26 = scmp.lt.s32.totalorder %s25, 0
      %s27 = scalar_select %p26, %s25, 0
      %s28 = smul.u32 5, %s27
      %p29 = scmp.lt.s32.totalorder %s28, 4
      %s30 = scalar_select %p29, %s28, 4
      %s31 = smul.addr %s30, 8
      %s32 = scalar_lea.vmem %s1, %s31
      %s33 = sadd.s32 0, 0
      %p34 = scmp.lt.s32.totalorder %s33, 0
      %s35 = scalar_select %p34, %s33, 0
      %s36 = smul.u32 5, %s35
    $region9: #{contrastive_loss.1} parent=1 // pred_fallthru
      _
    %s37 = sadd.s32 0, 0
    %p38 = scmp.lt.s32.totalorder %s37, 0
    %s39 = scalar_select %p38, %s37, 0
    %s40 = smul.u32 5, %s39
    %p41 = scmp.lt.s32.totalorder %s40, 4
    %s42 = scalar_select %p41, %s40, 4
    %s43 = smul.addr %s42, 2
    %s44 = smul.addr %s43, 8
    %s45 = scalar_lea.vmem %s0, %s44
    %s46 = sadd.s32 0, 0
    %p47 = scmp.lt.s32.totalorder %s46, 0
    %s48 = scalar_select %p47, %s46, 0
    %s49 = smul.u32 5, %s48
    %p50 = scmp.lt.s32.totalorder %s49, 4
    %s51 = scalar_select %p50, %s49, 4
    %s52 = smul.addr %s51, 8
    %s53 = scalar_lea.vmem %s1, %s52
    %s54 = sadd.s32 0, 0
    %p55 = scmp.lt.s32.totalorder %s54, 0
    %s56 = scalar_select %p55, %s54, 0
    %s57 = smul.u32 5, %s56
    %p58 = scmp.lt.s32.totalorder %s57, 4
    %s59 = scalar_select %p58, %s57, 4
    %s60 = smul.addr %s59, 2
    %s61 = smul.addr %s60, 8
    %s62 = scalar_lea.vmem %s0, %s61
    %s63 = sadd.s32 0, 0
    %p64 = scmp.lt.s32.totalorder %s63, 0
    %s65 = scalar_select %p64, %s63, 0
    %s66 = smul.u32 5, %s65
    %s67 = sadd.s32 0, 0
    %p68 = scmp.lt.s32.totalorder %s67, 0
    %s69 = scalar_select %p68, %s67, 0
    %s70 = smul.u32 5, %s69
    %p71 = scmp.lt.s32.totalorder %s70, 4
    %s72 = scalar_select %p71, %s70, 4
    %s73 = smul.addr %s72, 8
    %s74 = scalar_lea.vmem %s1, %s73
    %s75 = sadd.s32 0, 0
    %p76 = scmp.lt.s32.totalorder %s75, 0
    %s77 = scalar_select %p76, %s75, 0
    %s78 = smul.u32 5, %s77
    %p79 = scmp.eq.s32.totalorder 0, 0
    // Predicated region
    $region10: #{contrastive_loss.1} parent=1 // pred_check
      %p80 = pneg %p79
    $region11: #{contrastive_loss.1} parent=1 // pred_check_branch
      %82 = sbr.rel (%p80) target = $region13
    $region12: #{contrastive_loss.1} parent=1 // pred_region
      %vm83 = vcmask 7168
      %84 = vst.msk [vmem:[#allocation2] sm:$0xff] %vm83, 0.0
      %85 = vst.msk [vmem:[#allocation2 + $0x8] sm:$0xff] %vm83, 0.0
      %86 = vst.msk [vmem:[#allocation2 + $0x10] sm:$0xff] %vm83, 0.0
      %87 = vst.msk [vmem:[#allocation2 + $0x18] sm:$0xff] %vm83, 0.0
      %88 = vst.msk [vmem:[#allocation2 + $0x20] sm:$0xff] %vm83, 0.0
      %vm89 = vcmask 0
      %90 = vst.msk [vmem:[#allocation3] sm:$0x1] %vm89, 0.0
    $region13: #{contrastive_loss.1} parent=1 // pred_fallthru
      _
    %v91 = vld [vmem:[%s62] sm:$0xff]
    %v92 = vld [vmem:[%s62 + $0x8] sm:$0xff]
    %v93 = vld [vmem:[%s62 + $0x10] sm:$0xff]
    %v94 = vld [vmem:[%s62 + $0x18] sm:$0xff]
    %v95 = vld [vmem:[%s62 + $0x20] sm:$0xff]
    %v96 = vld [vmem:[%s62 + $0x28] sm:$0xff]
    %v97 = vld [vmem:[%s62 + $0x30] sm:$0xff]
    %v98 = vld [vmem:[%s62 + $0x38] sm:$0xff]
    %v99 = vld [vmem:[%s62 + $0x40] sm:$0xff]
    %v100 = vld [vmem:[%s62 + $0x48] sm:$0xff]
    %v101 = vsub.f32 %v91, %v92
    %v102 = vsub.f32 %v93, %v94
    %v103 = vsub.f32 %v95, %v96
    %v104 = vsub.f32 %v97, %v98
    %v105 = vsub.f32 %v99, %v100
    %v106 = vadd.f32 %v101, 1e-06
    %v107 = vadd.f32 %v102, 1e-06
    %v108 = vadd.f32 %v103, 1e-06
    %v109 = vadd.f32 %v104, 1e-06
    %v110 = vadd.f32 %v105, 1e-06
    %v111 = vmul.f32 %v106, %v106
    %v112 = vmul.f32 %v107, %v107
    %v113 = vmul.f32 %v108, %v108
    %v114 = vmul.f32 %v109, %v109
    %v115 = vmul.f32 %v110, %v110
    %116 = vadd.xlane.f32.xlu0 %v111
    %v117 = vpop.xlane.xlu0 %116
    %118 = vadd.xlane.f32.xlu0 %v112
    %v119 = vpop.xlane.xlu0 %118
    %120 = vadd.xlane.f32.xlu0 %v113
    %v121 = vpop.xlane.xlu0 %120
    %122 = vadd.xlane.f32.xlu0 %v114
    %v123 = vpop.xlane.xlu0 %122
    %124 = vadd.xlane.f32.xlu0 %v115
    %v125 = vpop.xlane.xlu0 %124
    %v126 = vrsqrt.pop %v117
    %v127 = vmul.f32 %v117, %v126
    %vm128 = vcmp.eq.f32.partialorder %v117, inf
    %v129 = vsel %vm128, %v117, %v127
    %vm130 = vcmp.eq.f32.partialorder %v117, 0.0
    %v131 = vand.u32 %v117, 2147483648
    %v132 = vsel %vm130, %v131, %v129
    %v133 = vrsqrt.pop %v119
    %v134 = vmul.f32 %v119, %v133
    %vm135 = vcmp.eq.f32.partialorder %v119, inf
    %v136 = vsel %vm135, %v119, %v134
    %vm137 = vcmp.eq.f32.partialorder %v119, 0.0
    %v138 = vand.u32 %v119, 2147483648
    %v139 = vsel %vm137, %v138, %v136
    %v140 = vrsqrt.pop %v121
    %v141 = vmul.f32 %v121, %v140
    %vm142 = vcmp.eq.f32.partialorder %v121, inf
    %v143 = vsel %vm142, %v121, %v141
    %vm144 = vcmp.eq.f32.partialorder %v121, 0.0
    %v145 = vand.u32 %v121, 2147483648
    %v146 = vsel %vm144, %v145, %v143
    %v147 = vrsqrt.pop %v123
    %v148 = vmul.f32 %v123, %v147
    %vm149 = vcmp.eq.f32.partialorder %v123, inf
    %v150 = vsel %vm149, %v123, %v148
    %vm151 = vcmp.eq.f32.partialorder %v123, 0.0
    %v152 = vand.u32 %v123, 2147483648
    %v153 = vsel %vm151, %v152, %v150
    %v154 = vrsqrt.pop %v125
    %v155 = vmul.f32 %v125, %v154
    %vm156 = vcmp.eq.f32.partialorder %v125, inf
    %v157 = vsel %vm156, %v125, %v155
    %vm158 = vcmp.eq.f32.partialorder %v125, 0.0
    %v159 = vand.u32 %v125, 2147483648
    %v160 = vsel %vm158, %v159, %v157
    %v161 = vld [vmem:[%s74] sm:$0xff]
    %v162 = vld [vmem:[%s74 + $0x8] sm:$0xff]
    %v163 = vld [vmem:[%s74 + $0x10] sm:$0xff]
    %v164 = vld [vmem:[%s74 + $0x18] sm:$0xff]
    %v165 = vld [vmem:[%s74 + $0x20] sm:$0xff]
    %v166 = vsub.f32 1.0, %v132
    %v167 = vsub.f32 1.0, %v139
    %v168 = vsub.f32 1.0, %v146
    %v169 = vsub.f32 1.0, %v153
    %v170 = vsub.f32 1.0, %v160
    %v171 = vmax.f32 %v166, 0.0
    %v172 = vmax.f32 %v167, 0.0
    %v173 = vmax.f32 %v168, 0.0
    %v174 = vmax.f32 %v169, 0.0
    %v175 = vmax.f32 %v170, 0.0
    %v176 = vsub.f32 1.0, %v161
    %v177 = vsub.f32 1.0, %v162
    %v178 = vsub.f32 1.0, %v163
    %v179 = vsub.f32 1.0, %v164
    %v180 = vsub.f32 1.0, %v165
    %v181 = vmul.f32 %v176, %v117
    %v182 = vmul.f32 %v177, %v119
    %v183 = vmul.f32 %v178, %v121
    %v184 = vmul.f32 %v179, %v123
    %v185 = vmul.f32 %v180, %v125
    %v186 = vmul.f32 %v161, %v171
    %v187 = vmul.f32 %v162, %v172
    %v188 = vmul.f32 %v163, %v173
    %v189 = vmul.f32 %v164, %v174
    %v190 = vmul.f32 %v165, %v175
    %v191 = vmul.f32 %v186, %v171
    %v192 = vmul.f32 %v187, %v172
    %v193 = vmul.f32 %v188, %v173
    %v194 = vmul.f32 %v189, %v174
    %v195 = vmul.f32 %v190, %v175
    %v196 = vadd.f32 %v181, %v191
    %v197 = vadd.f32 %v182, %v192
    %v198 = vadd.f32 %v183, %v193
    %v199 = vadd.f32 %v184, %v194
    %v200 = vadd.f32 %v185, %v195
    %v201 = vmul.f32 %v196, 0.5
    %v202 = vmul.f32 %v197, 0.5
    %v203 = vmul.f32 %v198, 0.5
    %v204 = vmul.f32 %v199, 0.5
    %v205 = vmul.f32 %v200, 0.5
    %s206 = sadd.s32 0, 0
    %v207 = vlaneseq
    %v208 = vshrl.u32 %v207, 7
    %v209 = vadd.s32 %v208, 8
    %v210 = vadd.s32 %v208, 16
    %v211 = vadd.s32 %v208, 24
    %v212 = vadd.s32 %v208, 32
    %s213 = smul.u32 %s206, 40
    %v214 = vstv %s213
    %v215 = vadd.s32 %v214, %v208
    %v216 = vadd.s32 %v214, %v209
    %v217 = vadd.s32 %v214, %v210
    %v218 = vadd.s32 %v214, %v211
    %v219 = vadd.s32 %v214, %v212
    %vm220 = vcmp.lt.s32.totalorder %v215, 36
    %vm221 = vcmp.lt.s32.totalorder %v216, 36
    %vm222 = vcmp.lt.s32.totalorder %v217, 36
    %vm223 = vcmp.lt.s32.totalorder %v218, 36
    %vm224 = vcmp.lt.s32.totalorder %v219, 36
    %v225 = vld [vmem:[#allocation2] sm:$0xff]
    %v226 = vld [vmem:[#allocation2 + $0x8] sm:$0xff]
    %v227 = vld [vmem:[#allocation2 + $0x10] sm:$0xff]
    %v228 = vld [vmem:[#allocation2 + $0x18] sm:$0xff]
    %v229 = vld [vmem:[#allocation2 + $0x20] sm:$0xff]
    %v230 = vsel %vm220, %v201, 0.0
    %v231 = vsel %vm221, %v202, 0.0
    %v232 = vsel %vm222, %v203, 0.0
    %v233 = vsel %vm223, %v204, 0.0
    %v234 = vsel %vm224, %v205, 0.0
    %v235 = vadd.f32 %v225, %v230
    %v236 = vadd.f32 %v226, %v231
    %v237 = vadd.f32 %v227, %v232
    %v238 = vadd.f32 %v228, %v233
    %v239 = vadd.f32 %v229, %v234
    %vm240 = vcmask 7168
    %241 = vst.msk [vmem:[#allocation2] sm:$0xff] %vm240, %v235
    %242 = vst.msk [vmem:[#allocation2 + $0x8] sm:$0xff] %vm240, %v236
    %243 = vst.msk [vmem:[#allocation2 + $0x10] sm:$0xff] %vm240, %v237
    %244 = vst.msk [vmem:[#allocation2 + $0x18] sm:$0xff] %vm240, %v238
    %245 = vst.msk [vmem:[#allocation2 + $0x20] sm:$0xff] %vm240, %v239
    // Predicated region
    $region14: #{contrastive_loss.1} parent=1 // pred_check
      %p246 = pneg %p79
    $region15: #{contrastive_loss.1} parent=1 // pred_check_branch
      %248 = sbr.rel (%p246) target = $region17
    $region16: #{contrastive_loss.1} parent=1 // pred_region
      %v249 = vld [vmem:[#allocation3] sm:$0x1]
      %v250 = vld [vmem:[#allocation2] sm:$0xff]
      %v251 = vld [vmem:[#allocation2 + $0x8] sm:$0xff]
      %v252 = vld [vmem:[#allocation2 + $0x10] sm:$0xff]
      %v253 = vld [vmem:[#allocation2 + $0x18] sm:$0xff]
      %v254 = vld [vmem:[#allocation2 + $0x20] sm:$0xff]
      %v255 = vsel %vm240, %v250, 0.0
      %v256 = vsel %vm240, %v251, 0.0
      %v257 = vadd.f32 %v255, %v256
      %v258 = vsel %vm240, %v252, 0.0
      %v259 = vadd.f32 %v257, %v258
      %v260 = vsel %vm240, %v253, 0.0
      %v261 = vadd.f32 %v259, %v260
      %v262 = vsel %vm240, %v254, 0.0
      %v263 = vadd.f32 %v261, %v262
      %v264 = vrot.slane %v263, 4
      %v265 = vadd.f32 %v263, %v264
      %v266 = vrot.slane %v265, 2
      %v267 = vadd.f32 %v265, %v266
      %v268 = vrot.slane %v267, 1
      %v269 = vadd.f32 %v267, %v268
      %v270 = vadd.f32 %v249, %v269
      %vm271 = vcmask 0
      %272 = vst.msk [vmem:[#allocation3] sm:$0x1] %vm271, %v270
    $region17: #{contrastive_loss.1} parent=1 // pred_fallthru
      _
    // Predicated region
    $region18: #{contrastive_loss.1} parent=1 // pred_check
      _
    $region19: #{contrastive_loss.1} parent=1 // pred_check_branch
      %274 = sbr.rel (0) target = $region21
    $region20: #{contrastive_loss.1} parent=1 // pred_region
      %s276 = ssub.s32 16, 16
      %277 = vsyncadd [#allocation4], %s276
      %s279 = sshll.u32 [#allocation3], 4
      %s280 = int_to_ptr.vmem [resolvable:$true] %s279
      %282 = dma.vmem_to_hbm [thread:$0]  %s280, 16, %s2, [#allocation4]
    $region21: #{contrastive_loss.1} parent=1 // pred_fallthru
      _
    // Predicated region
    $region22: #{contrastive_loss.1} parent=1 // pred_check
      _
    $region23: #{contrastive_loss.1} parent=1 // pred_check_branch
      %284 = sbr.rel (0) target = $region25
    $region24: #{contrastive_loss.1} parent=1 // pred_region
      %285 = dma.done [#allocation4], 16
    $region25: #{contrastive_loss.1} parent=1 // pred_fallthru
      _
    %286 = vsyncpa [#allocation4], 1

</llo_original>
